<compile_context>
chip_gen: v7x
topology: tpu7x:2x2x1
jax: 0.10.0
libtpu: 0.0.40
codegen_flags: <defaults>
</compile_context>

<pallas_src>
import jax
import jax.numpy as jnp
from jax.experimental import pallas as pl
from jax.experimental.pallas import tpu as pltpu

_LANE = 128
_SUBLANE = 8
_NEG_SLOPE = 0.01  # PyTorch F.leaky_relu default


def _round_up(x, m):
    return ((x + m - 1) // m) * m


def _ceil_div(a, b):
    return -(-a // b)


def _ph_ae_kernel(x_ref, eps_ref,
                  w0_ref, b0_ref, w1_ref, b1_ref,
                  wd0_ref, bd0_ref, wd1_ref, bd1_ref,
                  mu_ref, z_ref, res_ref):
    cdt = w0_ref.dtype   # MXU operand dtype (bf16 or f32)
    f32 = jnp.float32

    # encode0 + leaky_relu
    x = x_ref[...].astype(cdt)
    h = jnp.dot(x, w0_ref[...], preferred_element_type=f32) + b0_ref[...]
    h = jnp.maximum(h, _NEG_SLOPE * h)

    # encode1 (applied twice in the reference module -> logvar == mu; the
    # wrapper returns mu for both, saving one full HBM output stream).
    mu = jnp.dot(h.astype(cdt), w1_ref[...], preferred_element_type=f32) + b1_ref[...]
    mu_ref[...] = mu.astype(mu_ref.dtype)

    # reparameterize: z = eps * exp(0.5 * logvar) + mu   (logvar == mu)
    std = jnp.exp(0.5 * mu)
    z = eps_ref[...].astype(f32) * std + mu
    z_ref[...] = z.astype(z_ref.dtype)

    # decode0 + leaky_relu
    d = jnp.dot(z.astype(cdt), wd0_ref[...], preferred_element_type=f32) + bd0_ref[...]
    d = jnp.maximum(d, _NEG_SLOPE * d)

    # decode1 + sigmoid (tanh form: single EUP op per element)
    r = jnp.dot(d.astype(cdt), wd1_ref[...], preferred_element_type=f32) + bd1_ref[...]
    res_ref[...] = (0.5 * jnp.tanh(0.5 * r) + 0.5).astype(res_ref.dtype)


def ph_autoencoder_forward(features, eps, params, *, use_bf16=True, row_tile=512):
    """features: [B, firland] f32; eps: [B, lasland] f32 (N(0,1) noise).
    params: dict of pre-transposed weights [in, out] and (1, out) biases.
    Returns (mu, logvar, z, recon) matching the PyTorch module (logvar is mu,
    by construction of the reference forward)."""
    B, firland = features.shape
    midland = params["w0"].shape[1]
    lasland = params["w1"].shape[1]
    assert eps.shape == (B, lasland)

    # lane-dense (128-multiple) feature dims
    f_pad = _round_up(firland, _LANE)
    m_pad = _round_up(midland, _LANE)
    l_pad = _round_up(lasland, _LANE)

    # batch tiling: >=2 grid steps when possible (so v7x's 2nd TC is used),
    # and per-tile size chosen so padding waste stays bounded by one tile.
    nt = max(1, _ceil_div(B, row_tile))
    if nt < 2 and B > _SUBLANE:
        nt = 2
    tm = _round_up(_ceil_div(B, nt), _SUBLANE)
    nt = _ceil_div(B, tm)
    b_pad = tm * nt
    grid = (nt,)

    w_dtype = jnp.bfloat16 if use_bf16 else jnp.float32    # MXU operands + streams
    out_dtype = jnp.bfloat16 if use_bf16 else jnp.float32  # mu / z / recon outputs

    def pad2(a, rows, cols, dtype=None):
        a = jnp.asarray(a, jnp.float32)
        a = jnp.pad(a, ((0, rows - a.shape[0]), (0, cols - a.shape[1])))
        return a.astype(dtype) if dtype is not None else a

    x_p = pad2(features, b_pad, f_pad, w_dtype)   # bf16 input stream
    eps_p = pad2(eps, b_pad, l_pad, w_dtype)      # bf16 noise stream

    w0 = pad2(params["w0"], f_pad, m_pad, w_dtype)
    b0 = pad2(params["b0"], 1, m_pad)
    w1 = pad2(params["w1"], m_pad, l_pad, w_dtype)
    b1 = pad2(params["b1"], 1, l_pad)
    wd0 = pad2(params["wd0"], l_pad, m_pad, w_dtype)
    bd0 = pad2(params["bd0"], 1, m_pad)
    wd1 = pad2(params["wd1"], m_pad, f_pad, w_dtype)
    bd1 = pad2(params["bd1"], 1, f_pad)

    def row_spec(cols):
        return pl.BlockSpec((tm, cols), lambda i: (i, 0))

    def const_spec(shape):
        # constant index_map -> fetched once, never re-fetched; single-buffer
        # to halve its VMEM footprint.
        return pl.BlockSpec(shape, lambda i: (0, 0), pipeline_mode=pl.Buffered(1))

    # --- VMEM budget: weights once + double-buffered row tiles + f32 scratch ---
    wb = jnp.dtype(w_dtype).itemsize
    ob = jnp.dtype(out_dtype).itemsize
    resident_w = (f_pad * m_pad + m_pad * l_pad + l_pad * m_pad + m_pad * f_pad) * wb
    resident_b = 8 * (2 * m_pad + l_pad + f_pad) * 4          # biases, sublane-padded
    streamed_in = 2 * tm * (f_pad + l_pad) * wb                # x, eps (double-buffered)
    streamed_out = 2 * tm * (2 * l_pad + f_pad) * ob           # mu, z, recon
    scratch = 2 * tm * (m_pad + l_pad + f_pad) * 4             # f32 intermediates
    vmem_limit = resident_w + resident_b + streamed_in + streamed_out + scratch + (8 << 20)
    vmem_limit = int(min(max(vmem_limit, 32 << 20), 128 << 20))

    # --- advisory cost estimate (actual padded work / traffic) ---
    flops = 2 * b_pad * (f_pad * m_pad + 2 * m_pad * l_pad + m_pad * f_pad)
    transcendentals = b_pad * (l_pad + f_pad)                  # exp(std) + tanh(sigmoid)
    bytes_accessed = ((x_p.size + eps_p.size + w0.size + w1.size + wd0.size + wd1.size) * wb
                      + (b0.size + b1.size + bd0.size + bd1.size) * 4
                      + b_pad * (2 * l_pad + f_pad) * ob)
    cost = pl.CostEstimate(flops=int(flops), transcendentals=int(transcendentals),
                           bytes_accessed=int(bytes_accessed))

    mu_p, z_p, res_p = pl.pallas_call(
        _ph_ae_kernel,
        out_shape=(
            jax.ShapeDtypeStruct((b_pad, l_pad), out_dtype),   # mu
            jax.ShapeDtypeStruct((b_pad, l_pad), out_dtype),   # z
            jax.ShapeDtypeStruct((b_pad, f_pad), out_dtype),   # recon
        ),
        grid_spec=pltpu.PrefetchScalarGridSpec(
            num_scalar_prefetch=0,
            grid=grid,
            in_specs=[
                row_spec(f_pad), row_spec(l_pad),
                const_spec(w0.shape), const_spec(b0.shape),
                const_spec(w1.shape), const_spec(b1.shape),
                const_spec(wd0.shape), const_spec(bd0.shape),
                const_spec(wd1.shape), const_spec(bd1.shape),
            ],
            out_specs=(row_spec(l_pad), row_spec(l_pad), row_spec(f_pad)),
        ),
        compiler_params=pltpu.CompilerParams(
            dimension_semantics=("parallel",),
            vmem_limit_bytes=vmem_limit,
        ),
        cost_estimate=cost,
    )(x_p, eps_p, w0, b0, w1, b1, wd0, bd0, wd1, bd1)

    mu = mu_p[:B, :lasland].astype(jnp.float32)
    z = z_p[:B, :lasland].astype(jnp.float32)
    recon = res_p[:B, :firland].astype(jnp.float32)
    # NOTE: the source module applies encode1 twice, so logvar == mu exactly.
    # If the source is ever given a separate logvar head, this must change.
    return mu, mu, z, recon


def init_params(key, firland, midland, lasland):
    """PyTorch-like uniform(-1/sqrt(in), 1/sqrt(in)) init.
    Weights are stored pre-transposed: [in_features, out_features]."""
    ks = jax.random.split(key, 8)

    def lin(kw, kb, fan_in, fan_out):
        bound = 1.0 / jnp.sqrt(fan_in)
        w = jax.random.uniform(kw, (fan_in, fan_out), jnp.float32, -bound, bound)
        b = jax.random.uniform(kb, (1, fan_out), jnp.float32, -bound, bound)
        return w, b

    w0, b0 = lin(ks[0], ks[1], firland, midland)    # encode0
    w1, b1 = lin(ks[2], ks[3], midland, lasland)    # encode1
    wd0, bd0 = lin(ks[4], ks[5], lasland, midland)  # decode0
    wd1, bd1 = lin(ks[6], ks[7], midland, firland)  # decode1
    return dict(w0=w0, b0=b0, w1=w1, b1=b1,
                wd0=wd0, bd0=bd0, wd1=wd1, bd1=bd1)


if __name__ == "__main__":
    firland, midland, lasland = 64, 32, 16
    B = 10   # > 8 so the multi-step grid / padded-tail path is exercised

    key = jax.random.PRNGKey(0)
    k_x, k_eps, k_p = jax.random.split(key, 3)

    features = jax.random.normal(k_x, (B, firland), jnp.float32)
    # TODO(synk): torch.randn_like noise is supplied as an explicit eps input
    # (no in-kernel RNG) so results are deterministic/reproducible.
    eps = jax.random.normal(k_eps, (B, lasland), jnp.float32)
    params = init_params(k_p, firland, midland, lasland)

    mu, logvar, z, recon = ph_autoencoder_forward(features, eps, params,
                                                  use_bf16=True)
    jax.block_until_ready((mu, logvar, z, recon))

    # plain-JAX reference using the same bf16 matmul operands / f32 accumulation
    def ref_forward(x, e, p, use_bf16=True):
        cdt = jnp.bfloat16 if use_bf16 else jnp.float32

        def lin(a, w, b):
            return jnp.dot(a.astype(cdt), jnp.asarray(w, cdt),
                           preferred_element_type=jnp.float32) + b

        h = lin(x, p["w0"], p["b0"])
        h = jnp.maximum(h, 0.01 * h)
        mu_r = lin(h, p["w1"], p["b1"])
        e32 = e.astype(cdt).astype(jnp.float32) if use_bf16 else e
        z_r = e32 * jnp.exp(0.5 * mu_r) + mu_r
        d = lin(z_r, p["wd0"], p["bd0"])
        d = jnp.maximum(d, 0.01 * d)
        r = lin(d, p["wd1"], p["bd1"])
        return mu_r, mu_r, z_r, jax.nn.sigmoid(r)

    mu_r, logvar_r, z_r, recon_r = ref_forward(features, eps, params)

    def close(a, b):
        # 1e-2 tolerance absorbs bf16 rounding on the stored mu/z/recon outputs
        return jnp.allclose(a, b, atol=1e-2, rtol=1e-2)

    assert mu.shape == (B, lasland) and recon.shape == (B, firland)
    assert z.shape == (B, lasland) and logvar.shape == (B, lasland)
    assert close(mu, mu_r)
    assert close(logvar, logvar_r)
    assert close(z, z_r)
    assert close(recon, recon_r)

    print("KERNEL_OK")
</pallas_src>

<mosaic_0001>
module attributes {stable_mosaic.version = 11 : i64} {
  func.func @_ph_ae_kernel(%arg0: i32, %arg1: memref<8x128xbf16, #tpu.memory_space<vmem>>, %arg2: memref<8x128xbf16, #tpu.memory_space<vmem>>, %arg3: memref<128x128xbf16, #tpu.memory_space<vmem>>, %arg4: memref<1x128xf32, #tpu.memory_space<vmem>>, %arg5: memref<128x128xbf16, #tpu.memory_space<vmem>>, %arg6: memref<1x128xf32, #tpu.memory_space<vmem>>, %arg7: memref<128x128xbf16, #tpu.memory_space<vmem>>, %arg8: memref<1x128xf32, #tpu.memory_space<vmem>>, %arg9: memref<128x128xbf16, #tpu.memory_space<vmem>>, %arg10: memref<1x128xf32, #tpu.memory_space<vmem>>, %arg11: memref<8x128xbf16, #tpu.memory_space<vmem>>, %arg12: memref<8x128xbf16, #tpu.memory_space<vmem>>, %arg13: memref<8x128xbf16, #tpu.memory_space<vmem>>) attributes {dimension_semantics = [#tpu.dimension_semantics<parallel>], iteration_bounds = array<i64: 2>, scalar_prefetch = 0 : i64, scratch_operands = 0 : i64, tpu.core_type = #tpu.core_type<tc>, window_params = [{transform_indices = @transform_0, window_bounds = array<i64: 8, 128>}, {transform_indices = @transform_1, window_bounds = array<i64: 8, 128>}, {pipeline_mode = #tpu.pipeline_mode<synchronous>, transform_indices = @transform_2, window_bounds = array<i64: 128, 128>}, {pipeline_mode = #tpu.pipeline_mode<synchronous>, transform_indices = @transform_3, window_bounds = array<i64: 1, 128>}, {pipeline_mode = #tpu.pipeline_mode<synchronous>, transform_indices = @transform_4, window_bounds = array<i64: 128, 128>}, {pipeline_mode = #tpu.pipeline_mode<synchronous>, transform_indices = @transform_5, window_bounds = array<i64: 1, 128>}, {pipeline_mode = #tpu.pipeline_mode<synchronous>, transform_indices = @transform_6, window_bounds = array<i64: 128, 128>}, {pipeline_mode = #tpu.pipeline_mode<synchronous>, transform_indices = @transform_7, window_bounds = array<i64: 1, 128>}, {pipeline_mode = #tpu.pipeline_mode<synchronous>, transform_indices = @transform_8, window_bounds = array<i64: 128, 128>}, {pipeline_mode = #tpu.pipeline_mode<synchronous>, transform_indices = @transform_9, window_bounds = array<i64: 1, 128>}, {transform_indices = @transform_10, window_bounds = array<i64: 8, 128>}, {transform_indices = @transform_11, window_bounds = array<i64: 8, 128>}, {transform_indices = @transform_12, window_bounds = array<i64: 8, 128>}]} {
    %c0 = arith.constant 0 : index
    %c0_0 = arith.constant 0 : index
    %0 = vector.load %arg1[%c0, %c0_0] : memref<8x128xbf16, #tpu.memory_space<vmem>>, vector<8x128xbf16>
    %c0_1 = arith.constant 0 : index
    %c0_2 = arith.constant 0 : index
    %1 = vector.load %arg3[%c0_1, %c0_2] : memref<128x128xbf16, #tpu.memory_space<vmem>>, vector<128x128xbf16>
    %cst = arith.constant dense<0.000000e+00> : vector<8x128xf32>
    %2 = tpu.matmul %0, %1, %cst {dimension_numbers = #tpu.dot_dimension_numbers<[1], [0], [0], [1], [0, 0, 1, 1], [], []>} : vector<8x128xbf16>, vector<128x128xbf16>, vector<8x128xf32> -> vector<8x128xf32>
    %c0_3 = arith.constant 0 : index
    %c0_4 = arith.constant 0 : index
    %3 = vector.load %arg4[%c0_3, %c0_4] : memref<1x128xf32, #tpu.memory_space<vmem>>, vector<1x128xf32>
    %4 = vector.broadcast %3 : vector<1x128xf32> to vector<8x128xf32>
    %5 = arith.addf %2, %4 : vector<8x128xf32>
    %cst_5 = arith.constant 0.00999999977 : f32
    %6 = vector.broadcast %cst_5 : f32 to vector<8x128xf32>
    %7 = arith.mulf %6, %5 : vector<8x128xf32>
    %8 = arith.maximumf %5, %7 : vector<8x128xf32>
    %9 = arith.truncf %8 : vector<8x128xf32> to vector<8x128xbf16>
    %c0_6 = arith.constant 0 : index
    %c0_7 = arith.constant 0 : index
    %10 = vector.load %arg5[%c0_6, %c0_7] : memref<128x128xbf16, #tpu.memory_space<vmem>>, vector<128x128xbf16>
    %cst_8 = arith.constant dense<0.000000e+00> : vector<8x128xf32>
    %11 = tpu.matmul %9, %10, %cst_8 {dimension_numbers = #tpu.dot_dimension_numbers<[1], [0], [0], [1], [0, 0, 1, 1], [], []>} : vector<8x128xbf16>, vector<128x128xbf16>, vector<8x128xf32> -> vector<8x128xf32>
    %c0_9 = arith.constant 0 : index
    %c0_10 = arith.constant 0 : index
    %12 = vector.load %arg6[%c0_9, %c0_10] : memref<1x128xf32, #tpu.memory_space<vmem>>, vector<1x128xf32>
    %13 = vector.broadcast %12 : vector<1x128xf32> to vector<8x128xf32>
    %14 = arith.addf %11, %13 : vector<8x128xf32>
    %15 = arith.truncf %14 : vector<8x128xf32> to vector<8x128xbf16>
    %c0_11 = arith.constant 0 : index
    %c0_12 = arith.constant 0 : index
    %16 = vector.load %arg11[%c0_11, %c0_12] : memref<8x128xbf16, #tpu.memory_space<vmem>>, vector<8x128xbf16>
    tpu.vector_store %arg11[%c0_11, %c0_12], %15 {strides = array<i32>} : memref<8x128xbf16, #tpu.memory_space<vmem>>, vector<8x128xbf16>,
    %cst_13 = arith.constant 5.000000e-01 : f32
    %17 = vector.broadcast %cst_13 : f32 to vector<8x128xf32>
    %18 = arith.mulf %17, %14 : vector<8x128xf32>
    %19 = math.exp %18 : vector<8x128xf32>
    %c0_14 = arith.constant 0 : index
    %c0_15 = arith.constant 0 : index
    %20 = vector.load %arg2[%c0_14, %c0_15] : memref<8x128xbf16, #tpu.memory_space<vmem>>, vector<8x128xbf16>
    %21 = arith.extf %20 : vector<8x128xbf16> to vector<8x128xf32>
    %22 = arith.mulf %21, %19 : vector<8x128xf32>
    %23 = arith.addf %22, %14 : vector<8x128xf32>
    %24 = arith.truncf %23 : vector<8x128xf32> to vector<8x128xbf16>
    %c0_16 = arith.constant 0 : index
    %c0_17 = arith.constant 0 : index
    %25 = vector.load %arg12[%c0_16, %c0_17] : memref<8x128xbf16, #tpu.memory_space<vmem>>, vector<8x128xbf16>
    tpu.vector_store %arg12[%c0_16, %c0_17], %24 {strides = array<i32>} : memref<8x128xbf16, #tpu.memory_space<vmem>>, vector<8x128xbf16>,
    %26 = arith.truncf %23 : vector<8x128xf32> to vector<8x128xbf16>
    %c0_18 = arith.constant 0 : index
    %c0_19 = arith.constant 0 : index
    %27 = vector.load %arg7[%c0_18, %c0_19] : memref<128x128xbf16, #tpu.memory_space<vmem>>, vector<128x128xbf16>
    %cst_20 = arith.constant dense<0.000000e+00> : vector<8x128xf32>
    %28 = tpu.matmul %26, %27, %cst_20 {dimension_numbers = #tpu.dot_dimension_numbers<[1], [0], [0], [1], [0, 0, 1, 1], [], []>} : vector<8x128xbf16>, vector<128x128xbf16>, vector<8x128xf32> -> vector<8x128xf32>
    %c0_21 = arith.constant 0 : index
    %c0_22 = arith.constant 0 : index
    %29 = vector.load %arg8[%c0_21, %c0_22] : memref<1x128xf32, #tpu.memory_space<vmem>>, vector<1x128xf32>
    %30 = vector.broadcast %29 : vector<1x128xf32> to vector<8x128xf32>
    %31 = arith.addf %28, %30 : vector<8x128xf32>
    %cst_23 = arith.constant 0.00999999977 : f32
    %32 = vector.broadcast %cst_23 : f32 to vector<8x128xf32>
    %33 = arith.mulf %32, %31 : vector<8x128xf32>
    %34 = arith.maximumf %31, %33 : vector<8x128xf32>
    %35 = arith.truncf %34 : vector<8x128xf32> to vector<8x128xbf16>
    %c0_24 = arith.constant 0 : index
    %c0_25 = arith.constant 0 : index
    %36 = vector.load %arg9[%c0_24, %c0_25] : memref<128x128xbf16, #tpu.memory_space<vmem>>, vector<128x128xbf16>
    %cst_26 = arith.constant dense<0.000000e+00> : vector<8x128xf32>
    %37 = tpu.matmul %35, %36, %cst_26 {dimension_numbers = #tpu.dot_dimension_numbers<[1], [0], [0], [1], [0, 0, 1, 1], [], []>} : vector<8x128xbf16>, vector<128x128xbf16>, vector<8x128xf32> -> vector<8x128xf32>
    %c0_27 = arith.constant 0 : index
    %c0_28 = arith.constant 0 : index
    %38 = vector.load %arg10[%c0_27, %c0_28] : memref<1x128xf32, #tpu.memory_space<vmem>>, vector<1x128xf32>
    %39 = vector.broadcast %38 : vector<1x128xf32> to vector<8x128xf32>
    %40 = arith.addf %37, %39 : vector<8x128xf32>
    %cst_29 = arith.constant 5.000000e-01 : f32
    %41 = vector.broadcast %cst_29 : f32 to vector<8x128xf32>
    %42 = arith.mulf %41, %40 : vector<8x128xf32>
    %43 = math.tanh %42 : vector<8x128xf32>
    %cst_30 = arith.constant 5.000000e-01 : f32
    %44 = vector.broadcast %cst_30 : f32 to vector<8x128xf32>
    %45 = arith.mulf %44, %43 : vector<8x128xf32>
    %cst_31 = arith.constant 5.000000e-01 : f32
    %46 = vector.broadcast %cst_31 : f32 to vector<8x128xf32>
    %47 = arith.addf %45, %46 : vector<8x128xf32>
    %48 = arith.truncf %47 : vector<8x128xf32> to vector<8x128xbf16>
    %c0_32 = arith.constant 0 : index
    %c0_33 = arith.constant 0 : index
    %49 = vector.load %arg13[%c0_32, %c0_33] : memref<8x128xbf16, #tpu.memory_space<vmem>>, vector<8x128xbf16>
    tpu.vector_store %arg13[%c0_32, %c0_33], %48 {strides = array<i32>} : memref<8x128xbf16, #tpu.memory_space<vmem>>, vector<8x128xbf16>,
    return
  }
  func.func @transform_0(%arg0: i32) -> (i32, i32) {
    %c0_i32 = arith.constant 0 : i32
    %c0_i32_0 = arith.constant 0 : i32
    return %arg0, %c0_i32 : i32, i32
  }
  func.func @transform_1(%arg0: i32) -> (i32, i32) {
    %c0_i32 = arith.constant 0 : i32
    %c0_i32_0 = arith.constant 0 : i32
    return %arg0, %c0_i32 : i32, i32
  }
  func.func @transform_2(%arg0: i32) -> (i32, i32) {
    %c0_i32 = arith.constant 0 : i32
    %c0_i32_0 = arith.constant 0 : i32
    %c0_i32_1 = arith.constant 0 : i32
    return %c0_i32, %c0_i32_0 : i32, i32
  }
  func.func @transform_3(%arg0: i32) -> (i32, i32) {
    %c0_i32 = arith.constant 0 : i32
    %c0_i32_0 = arith.constant 0 : i32
    %c0_i32_1 = arith.constant 0 : i32
    return %c0_i32, %c0_i32_0 : i32, i32
  }
  func.func @transform_4(%arg0: i32) -> (i32, i32) {
    %c0_i32 = arith.constant 0 : i32
    %c0_i32_0 = arith.constant 0 : i32
    %c0_i32_1 = arith.constant 0 : i32
    return %c0_i32, %c0_i32_0 : i32, i32
  }
  func.func @transform_5(%arg0: i32) -> (i32, i32) {
    %c0_i32 = arith.constant 0 : i32
    %c0_i32_0 = arith.constant 0 : i32
    %c0_i32_1 = arith.constant 0 : i32
    return %c0_i32, %c0_i32_0 : i32, i32
  }
  func.func @transform_6(%arg0: i32) -> (i32, i32) {
    %c0_i32 = arith.constant 0 : i32
    %c0_i32_0 = arith.constant 0 : i32
    %c0_i32_1 = arith.constant 0 : i32
    return %c0_i32, %c0_i32_0 : i32, i32
  }
  func.func @transform_7(%arg0: i32) -> (i32, i32) {
    %c0_i32 = arith.constant 0 : i32
    %c0_i32_0 = arith.constant 0 : i32
    %c0_i32_1 = arith.constant 0 : i32
    return %c0_i32, %c0_i32_0 : i32, i32
  }
  func.func @transform_8(%arg0: i32) -> (i32, i32) {
    %c0_i32 = arith.constant 0 : i32
    %c0_i32_0 = arith.constant 0 : i32
    %c0_i32_1 = arith.constant 0 : i32
    return %c0_i32, %c0_i32_0 : i32, i32
  }
  func.func @transform_9(%arg0: i32) -> (i32, i32) {
    %c0_i32 = arith.constant 0 : i32
    %c0_i32_0 = arith.constant 0 : i32
    %c0_i32_1 = arith.constant 0 : i32
    return %c0_i32, %c0_i32_0 : i32, i32
  }
  func.func @transform_10(%arg0: i32) -> (i32, i32) {
    %c0_i32 = arith.constant 0 : i32
    %c0_i32_0 = arith.constant 0 : i32
    return %arg0, %c0_i32 : i32, i32
  }
  func.func @transform_11(%arg0: i32) -> (i32, i32) {
    %c0_i32 = arith.constant 0 : i32
    %c0_i32_0 = arith.constant 0 : i32
    return %arg0, %c0_i32 : i32, i32
  }
  func.func @transform_12(%arg0: i32) -> (i32, i32) {
    %c0_i32 = arith.constant 0 : i32
    %c0_i32_0 = arith.constant 0 : i32
    return %arg0, %c0_i32 : i32, i32
  }
}

</mosaic_0001>

<llo_original>
// kernel: tpu_custom_call.1
$region0: #{tpu_custom_call.1}
  #allocation0 [shape = 'u32[]', space=smem, size = 0x4, offset = 0x4, fixed_abs, tag = 'smem constant byte address 0x4 - core index']
  #allocation1 [shape = 'u32[144,128]{1,0:T(1,128)}', space=vmem, size = 0x12000, scoped, tag = 'internal scratch']
  %s0 = inlined_call_operand.hbm [shape: bf16[16,128], index: 0, kind: input, shape index: {}]
  %s1 = inlined_call_operand.hbm [shape: bf16[16,128], index: 1, kind: input, shape index: {}]
  %s2 = inlined_call_operand.hbm [shape: bf16[128,128], index: 2, kind: input, shape index: {}]
  %s3 = inlined_call_operand.vmem [shape: f32[1,128], index: 3, kind: input, shape index: {}]
  %s4 = inlined_call_operand.hbm [shape: bf16[128,128], index: 4, kind: input, shape index: {}]
  %s5 = inlined_call_operand.vmem [shape: f32[1,128], index: 5, kind: input, shape index: {}]
  %s6 = inlined_call_operand.hbm [shape: bf16[128,128], index: 6, kind: input, shape index: {}]
  %s7 = inlined_call_operand.vmem [shape: f32[1,128], index: 7, kind: input, shape index: {}]
  %s8 = inlined_call_operand.hbm [shape: bf16[128,128], index: 8, kind: input, shape index: {}]
  %s9 = inlined_call_operand.vmem [shape: f32[1,128], index: 9, kind: input, shape index: {}]
  %s10 = inlined_call_operand.hbm [shape: bf16[16,128], index: 10, kind: output, shape index: {0}]
  %s11 = inlined_call_operand.hbm [shape: bf16[16,128], index: 11, kind: output, shape index: {1}]
  %s12 = inlined_call_operand.hbm [shape: bf16[16,128], index: 12, kind: output, shape index: {2}]
  %13 = xla_tuple %s10, %s11, %s12
  %s14 = sld [smem:[#allocation0]]
  $region113: #{tpu_custom_call.1} parent=0
    _
  %s16 = ssub.s32 1, %s14
  %s17 = scalar_select 0, %s16, %s14
  $region1: #{tpu_custom_call.1} parent=0
    #allocation2 [shape = 'u8[4096]{0}', space=vmem, size = 0x1000, scoped, tag = 'input window, operand 0']
    #allocation3 [shape = 's32[2]{0}', space=sflag, size = 0x8, scoped, tag = 'scoped memory for tpu_custom_call.1']
    #allocation4 [shape = 's32[2]{0}', space=sflag, size = 0x8, scoped, tag = 'scoped memory for tpu_custom_call.1']
    #allocation5 [shape = 'u8[4096]{0}', space=vmem, size = 0x1000, scoped, tag = 'input window, operand 1']
    #allocation6 [shape = 's32[2]{0}', space=sflag, size = 0x8, scoped, tag = 'scoped memory for tpu_custom_call.1']
    #allocation7 [shape = 'u8[32768]{0}', space=vmem, size = 0x8000, scoped, tag = 'input window, operand 2, single buffered']
    #allocation8 [shape = 'u8[32768]{0}', space=vmem, size = 0x8000, scoped, tag = 'input window, operand 4, single buffered']
    #allocation9 [shape = 's32[1]{0}', space=sflag, size = 0x4, scoped, tag = 'scoped memory for tpu_custom_call.1']
    #allocation10 [shape = 'u8[32768]{0}', space=vmem, size = 0x8000, scoped, tag = 'input window, operand 6, single buffered']
    #allocation11 [shape = 'u8[32768]{0}', space=vmem, size = 0x8000, scoped, tag = 'input window, operand 8, single buffered']
    #allocation12 [shape = 's32[1]{0}', space=sflag, size = 0x4, scoped, tag = 'scoped memory for tpu_custom_call.1']
    #allocation13 [shape = 'u8[4096]{0}', space=vmem, size = 0x1000, scoped, tag = 'output window, operand 0']
    #allocation14 [shape = 'u8[4096]{0}', space=vmem, size = 0x1000, scoped, tag = 'output window, operand 1']
    #allocation15 [shape = 's32[2]{0}', space=sflag, size = 0x8, scoped, tag = 'scoped memory for tpu_custom_call.1']
    #allocation16 [shape = 'u8[4096]{0}', space=vmem, size = 0x1000, scoped, tag = 'output window, operand 2']
    %18 = vsyncpa [#allocation3], 0
    %s19 = scalar_lea.sflag [#allocation3], 1
    %20 = vsyncpa %s19, 0
    %21 = vsyncpa [#allocation6], 0
    %s22 = scalar_lea.sflag [#allocation6], 1
    %23 = vsyncpa %s22, 0
    %24 = vsyncpa [#allocation9], 0
    %25 = vsyncpa [#allocation12], 0
    %26 = vsyncpa [#allocation4], 0
    %s27 = scalar_lea.sflag [#allocation4], 1
    %28 = vsyncpa %s27, 0
    %29 = vsyncpa [#allocation15], 0
    %s30 = scalar_lea.sflag [#allocation15], 1
    %31 = vsyncpa %s30, 0
    loop: start=0, step=1, limit=4
    $region2: #{tpu_custom_call.1} parent=1 // loop_pre_header
      _
    $region3: #{tpu_custom_call.1} parent=1 // loop_header
      %s33 = sphi 0, %s37
      %p34 = scmp.ge.s32.totalorder %s33, 4
      %s43 = sphi 0, %s45
      %s46 = sphi 0, %s43
      %s47 = sphi 0, %s46
      %s63 = sphi 0, %s47
      %s69 = sphi 0, %s71
      %s72 = sphi 0, %s69
      %s73 = sphi 0, %s72
      %s89 = sphi 0, %s73
      %s93 = sphi 0, %s93
      %s95 = sphi 0, %s93
      %s96 = sphi 0, %s95
      %s110 = sphi 0, %s96
      %s114 = sphi 0, %s114
      %s116 = sphi 0, %s114
      %s117 = sphi 0, %s116
      %s131 = sphi 0, %s117
      %s135 = sphi 0, %s135
      %s137 = sphi 0, %s135
      %s138 = sphi 0, %s137
      %s152 = sphi 0, %s138
      %s156 = sphi 0, %s156
      %s158 = sphi 0, %s156
      %s159 = sphi 0, %s158
      %s173 = sphi 0, %s159
      %s177 = sphi 0, %s177
      %s179 = sphi 0, %s177
      %s180 = sphi 0, %s179
      %s194 = sphi 0, %s180
      %s198 = sphi 0, %s198
      %s200 = sphi 0, %s198
      %s201 = sphi 0, %s200
      %s215 = sphi 0, %s201
      %s219 = sphi 0, %s219
      %s221 = sphi 0, %s219
      %s222 = sphi 0, %s221
      %s236 = sphi 0, %s222
      %s240 = sphi 0, %s240
      %s242 = sphi 0, %s240
      %s243 = sphi 0, %s242
      %s257 = sphi 0, %s243
      %s263 = sphi 0, %s265
      %s266 = sphi 0, %s263
      %s267 = sphi 0, %s266
      %s283 = sphi 0, %s267
      %s289 = sphi 0, %s291
      %s292 = sphi 0, %s289
      %s293 = sphi 0, %s292
      %s309 = sphi 0, %s293
      %s315 = sphi 0, %s317
      %s318 = sphi 0, %s315
      %s319 = sphi 0, %s318
      %s335 = sphi 0, %s319
    $region4: #{tpu_custom_call.1} parent=1 // loop_header_branch
      %36 = sbr.rel (%p34) target = $region8
    $region5: #{tpu_custom_call.1} parent=1 // loop_body
      %s38 = ssub.s32 %s33, 1
      %s39 = ssub.s32 %s33, 2
      %s40 = sadd.s32 %s33, 1
      %s41 = ssub.s32 %s33, %s40
      %p42 = scmp.eq.s32.totalorder %s41, 0
      %s44 = sadd.s32 %s43, 1
      %s45 = scalar_select %p42, %s43, %s44
      %p48 = pneg %p42
      %p49 = scmp.eq.s32.totalorder %s33, 1
      %p50 = por %p48, %p49
      %p51 = scmp.ne.s32.totalorder %s43, %s46
      %p52 = scmp.eq.s32.totalorder %s33, 0
      %p53 = por %p51, %p52
      %p54 = scmp.ne.s32.totalorder %s43, %s46
      %p55 = scmp.eq.s32.totalorder %s38, 1
      %p56 = por %p54, %p55
      %p57 = scmp.ne.s32.totalorder %s46, %s47
      %p58 = scmp.eq.s32.totalorder %s38, 0
      %p59 = por %p57, %p58
      %p60 = scmp.ne.s32.totalorder %s46, %s47
      %p61 = scmp.eq.s32.totalorder %s39, 1
      %p62 = por %p60, %p61
      %p64 = scmp.ne.s32.totalorder %s47, %s63
      %p65 = scmp.eq.s32.totalorder %s39, 0
      %p66 = por %p64, %p65
      %s67 = ssub.s32 %s33, %s40
      %p68 = scmp.eq.s32.totalorder %s67, 0
      %s70 = sadd.s32 %s69, 1
      %s71 = scalar_select %p68, %s69, %s70
      %p74 = pneg %p68
      %p75 = scmp.eq.s32.totalorder %s33, 1
      %p76 = por %p74, %p75
      %p77 = scmp.ne.s32.totalorder %s69, %s72
      %p78 = scmp.eq.s32.totalorder %s33, 0
      %p79 = por %p77, %p78
      %p80 = scmp.ne.s32.totalorder %s69, %s72
      %p81 = scmp.eq.s32.totalorder %s38, 1
      %p82 = por %p80, %p81
      %p83 = scmp.ne.s32.totalorder %s72, %s73
      %p84 = scmp.eq.s32.totalorder %s38, 0
      %p85 = por %p83, %p84
      %p86 = scmp.ne.s32.totalorder %s72, %s73
      %p87 = scmp.eq.s32.totalorder %s39, 1
      %p88 = por %p86, %p87
      %p90 = scmp.ne.s32.totalorder %s73, %s89
      %p91 = scmp.eq.s32.totalorder %s39, 0
      %p92 = por %p90, %p91
      %s94 = sadd.s32 %s93, 1
      %p97 = scmp.eq.s32.totalorder %s33, 1
      %p98 = scmp.ne.s32.totalorder %s93, %s95
      %p99 = scmp.eq.s32.totalorder %s33, 0
      %p100 = por %p98, %p99
      %p101 = scmp.ne.s32.totalorder %s93, %s95
      %p102 = scmp.eq.s32.totalorder %s38, 1
      %p103 = por %p101, %p102
      %p104 = scmp.ne.s32.totalorder %s95, %s96
      %p105 = scmp.eq.s32.totalorder %s38, 0
      %p106 = por %p104, %p105
      %p107 = scmp.ne.s32.totalorder %s95, %s96
      %p108 = scmp.eq.s32.totalorder %s39, 1
      %p109 = por %p107, %p108
      %p111 = scmp.ne.s32.totalorder %s96, %s110
      %p112 = scmp.eq.s32.totalorder %s39, 0
      %p113 = por %p111, %p112
      %s115 = sadd.s32 %s114, 1
      %p118 = scmp.eq.s32.totalorder %s33, 1
      %p119 = scmp.ne.s32.totalorder %s114, %s116
      %p120 = scmp.eq.s32.totalorder %s33, 0
      %p121 = por %p119, %p120
      %p122 = scmp.ne.s32.totalorder %s114, %s116
      %p123 = scmp.eq.s32.totalorder %s38, 1
      %p124 = por %p122, %p123
      %p125 = scmp.ne.s32.totalorder %s116, %s117
      %p126 = scmp.eq.s32.totalorder %s38, 0
      %p127 = por %p125, %p126
      %p128 = scmp.ne.s32.totalorder %s116, %s117
      %p129 = scmp.eq.s32.totalorder %s39, 1
      %p130 = por %p128, %p129
      %p132 = scmp.ne.s32.totalorder %s117, %s131
      %p133 = scmp.eq.s32.totalorder %s39, 0
      %p134 = por %p132, %p133
      %s136 = sadd.s32 %s135, 1
      %p139 = scmp.eq.s32.totalorder %s33, 1
      %p140 = scmp.ne.s32.totalorder %s135, %s137
      %p141 = scmp.eq.s32.totalorder %s33, 0
      %p142 = por %p140, %p141
      %p143 = scmp.ne.s32.totalorder %s135, %s137
      %p144 = scmp.eq.s32.totalorder %s38, 1
      %p145 = por %p143, %p144
      %p146 = scmp.ne.s32.totalorder %s137, %s138
      %p147 = scmp.eq.s32.totalorder %s38, 0
      %p148 = por %p146, %p147
      %p149 = scmp.ne.s32.totalorder %s137, %s138
      %p150 = scmp.eq.s32.totalorder %s39, 1
      %p151 = por %p149, %p150
      %p153 = scmp.ne.s32.totalorder %s138, %s152
      %p154 = scmp.eq.s32.totalorder %s39, 0
      %p155 = por %p153, %p154
      %s157 = sadd.s32 %s156, 1
      %p160 = scmp.eq.s32.totalorder %s33, 1
      %p161 = scmp.ne.s32.totalorder %s156, %s158
      %p162 = scmp.eq.s32.totalorder %s33, 0
      %p163 = por %p161, %p162
      %p164 = scmp.ne.s32.totalorder %s156, %s158
      %p165 = scmp.eq.s32.totalorder %s38, 1
      %p166 = por %p164, %p165
      %p167 = scmp.ne.s32.totalorder %s158, %s159
      %p168 = scmp.eq.s32.totalorder %s38, 0
      %p169 = por %p167, %p168
      %p170 = scmp.ne.s32.totalorder %s158, %s159
      %p171 = scmp.eq.s32.totalorder %s39, 1
      %p172 = por %p170, %p171
      %p174 = scmp.ne.s32.totalorder %s159, %s173
      %p175 = scmp.eq.s32.totalorder %s39, 0
      %p176 = por %p174, %p175
      %s178 = sadd.s32 %s177, 1
      %p181 = scmp.eq.s32.totalorder %s33, 1
      %p182 = scmp.ne.s32.totalorder %s177, %s179
      %p183 = scmp.eq.s32.totalorder %s33, 0
      %p184 = por %p182, %p183
      %p185 = scmp.ne.s32.totalorder %s177, %s179
      %p186 = scmp.eq.s32.totalorder %s38, 1
      %p187 = por %p185, %p186
      %p188 = scmp.ne.s32.totalorder %s179, %s180
      %p189 = scmp.eq.s32.totalorder %s38, 0
      %p190 = por %p188, %p189
      %p191 = scmp.ne.s32.totalorder %s179, %s180
      %p192 = scmp.eq.s32.totalorder %s39, 1
      %p193 = por %p191, %p192
      %p195 = scmp.ne.s32.totalorder %s180, %s194
      %p196 = scmp.eq.s32.totalorder %s39, 0
      %p197 = por %p195, %p196
      %s199 = sadd.s32 %s198, 1
      %p202 = scmp.eq.s32.totalorder %s33, 1
      %p203 = scmp.ne.s32.totalorder %s198, %s200
      %p204 = scmp.eq.s32.totalorder %s33, 0
      %p205 = por %p203, %p204
      %p206 = scmp.ne.s32.totalorder %s198, %s200
      %p207 = scmp.eq.s32.totalorder %s38, 1
      %p208 = por %p206, %p207
      %p209 = scmp.ne.s32.totalorder %s200, %s201
      %p210 = scmp.eq.s32.totalorder %s38, 0
      %p211 = por %p209, %p210
      %p212 = scmp.ne.s32.totalorder %s200, %s201
      %p213 = scmp.eq.s32.totalorder %s39, 1
      %p214 = por %p212, %p213
      %p216 = scmp.ne.s32.totalorder %s201, %s215
      %p217 = scmp.eq.s32.totalorder %s39, 0
      %p218 = por %p216, %p217
      %s220 = sadd.s32 %s219, 1
      %p223 = scmp.eq.s32.totalorder %s33, 1
      %p224 = scmp.ne.s32.totalorder %s219, %s221
      %p225 = scmp.eq.s32.totalorder %s33, 0
      %p226 = por %p224, %p225
      %p227 = scmp.ne.s32.totalorder %s219, %s221
      %p228 = scmp.eq.s32.totalorder %s38, 1
      %p229 = por %p227, %p228
      %p230 = scmp.ne.s32.totalorder %s221, %s222
      %p231 = scmp.eq.s32.totalorder %s38, 0
      %p232 = por %p230, %p231
      %p233 = scmp.ne.s32.totalorder %s221, %s222
      %p234 = scmp.eq.s32.totalorder %s39, 1
      %p235 = por %p233, %p234
      %p237 = scmp.ne.s32.totalorder %s222, %s236
      %p238 = scmp.eq.s32.totalorder %s39, 0
      %p239 = por %p237, %p238
      %s241 = sadd.s32 %s240, 1
      %p244 = scmp.eq.s32.totalorder %s33, 1
      %p245 = scmp.ne.s32.totalorder %s240, %s242
      %p246 = scmp.eq.s32.totalorder %s33, 0
      %p247 = por %p245, %p246
      %p248 = scmp.ne.s32.totalorder %s240, %s242
      %p249 = scmp.eq.s32.totalorder %s38, 1
      %p250 = por %p248, %p249
      %p251 = scmp.ne.s32.totalorder %s242, %s243
      %p252 = scmp.eq.s32.totalorder %s38, 0
      %p253 = por %p251, %p252
      %p254 = scmp.ne.s32.totalorder %s242, %s243
      %p255 = scmp.eq.s32.totalorder %s39, 1
      %p256 = por %p254, %p255
      %p258 = scmp.ne.s32.totalorder %s243, %s257
      %p259 = scmp.eq.s32.totalorder %s39, 0
      %p260 = por %p258, %p259
      %s261 = ssub.s32 %s33, %s40
      %p262 = scmp.eq.s32.totalorder %s261, 0
      %s264 = sadd.s32 %s263, 1
      %s265 = scalar_select %p262, %s263, %s264
      %p268 = pneg %p262
      %p269 = scmp.eq.s32.totalorder %s33, 1
      %p270 = por %p268, %p269
      %p271 = scmp.ne.s32.totalorder %s263, %s266
      %p272 = scmp.eq.s32.totalorder %s33, 0
      %p273 = por %p271, %p272
      %p274 = scmp.ne.s32.totalorder %s263, %s266
      %p275 = scmp.eq.s32.totalorder %s38, 1
      %p276 = por %p274, %p275
      %p277 = scmp.ne.s32.totalorder %s266, %s267
      %p278 = scmp.eq.s32.totalorder %s38, 0
      %p279 = por %p277, %p278
      %p280 = scmp.ne.s32.totalorder %s266, %s267
      %p281 = scmp.eq.s32.totalorder %s39, 1
      %p282 = por %p280, %p281
      %p284 = scmp.ne.s32.totalorder %s267, %s283
      %p285 = scmp.eq.s32.totalorder %s39, 0
      %p286 = por %p284, %p285
      %s287 = ssub.s32 %s33, %s40
      %p288 = scmp.eq.s32.totalorder %s287, 0
      %s290 = sadd.s32 %s289, 1
      %s291 = scalar_select %p288, %s289, %s290
      %p294 = pneg %p288
      %p295 = scmp.eq.s32.totalorder %s33, 1
      %p296 = por %p294, %p295
      %p297 = scmp.ne.s32.totalorder %s289, %s292
      %p298 = scmp.eq.s32.totalorder %s33, 0
      %p299 = por %p297, %p298
      %p300 = scmp.ne.s32.totalorder %s289, %s292
      %p301 = scmp.eq.s32.totalorder %s38, 1
      %p302 = por %p300, %p301
      %p303 = scmp.ne.s32.totalorder %s292, %s293
      %p304 = scmp.eq.s32.totalorder %s38, 0
      %p305 = por %p303, %p304
      %p306 = scmp.ne.s32.totalorder %s292, %s293
      %p307 = scmp.eq.s32.totalorder %s39, 1
      %p308 = por %p306, %p307
      %p310 = scmp.ne.s32.totalorder %s293, %s309
      %p311 = scmp.eq.s32.totalorder %s39, 0
      %p312 = por %p310, %p311
      %s313 = ssub.s32 %s33, %s40
      %p314 = scmp.eq.s32.totalorder %s313, 0
      %s316 = sadd.s32 %s315, 1
      %s317 = scalar_select %p314, %s315, %s316
      %p320 = pneg %p314
      %p321 = scmp.eq.s32.totalorder %s33, 1
      %p322 = por %p320, %p321
      %p323 = scmp.ne.s32.totalorder %s315, %s318
      %p324 = scmp.eq.s32.totalorder %s33, 0
      %p325 = por %p323, %p324
      %p326 = scmp.ne.s32.totalorder %s315, %s318
      %p327 = scmp.eq.s32.totalorder %s38, 1
      %p328 = por %p326, %p327
      %p329 = scmp.ne.s32.totalorder %s318, %s319
      %p330 = scmp.eq.s32.totalorder %s38, 0
      %p331 = por %p329, %p330
      %p332 = scmp.ne.s32.totalorder %s318, %s319
      %p333 = scmp.eq.s32.totalorder %s39, 1
      %p334 = por %p332, %p333
      %p336 = scmp.ne.s32.totalorder %s319, %s335
      %p337 = scmp.eq.s32.totalorder %s39, 0
      %p338 = por %p336, %p337
      %p339 = scmp.le.s32.totalorder 1, %s33
      %p340 = scmp.lt.s32.totalorder %s33, 3
      %p341 = pnand %p339, %p340
      %p342 = pneg %p341
      // Predicated region
      $region9: #{tpu_custom_call.1} parent=5 // pred_check
        _
      $region10: #{tpu_custom_call.1} parent=5 // pred_check_branch
        %344 = sbr.rel (%p341) target = $region12
      $region11: #{tpu_custom_call.1} parent=5 // pred_region
        %s345 = ssub.s32 %s33, 1
        // Predicated region
        $region13: #{tpu_custom_call.1} parent=11 // pred_check
          %p346 = pneg %p106
        $region14: #{tpu_custom_call.1} parent=11 // pred_check_branch
          %348 = sbr.rel (%p346) target = $region16
        $region15: #{tpu_custom_call.1} parent=11 // pred_region
          %s350 = ssub.s32 1024, 1024
          %351 = vsyncadd [#allocation6], %s350
          %s352 = sshll.u32 [#allocation7], 4
          %s353 = int_to_ptr.vmem [resolvable:$true] %s352
          %358 = dma.hbm_to_vmem [thread:$0]  %s2, 1024, %s353, [#allocation6], 64, 64, 4
        $region16: #{tpu_custom_call.1} parent=11 // pred_fallthru
          _
        // Predicated region
        $region17: #{tpu_custom_call.1} parent=11 // pred_check
          %p359 = pneg %p127
        $region18: #{tpu_custom_call.1} parent=11 // pred_check_branch
          %361 = sbr.rel (%p359) target = $region20
        $region19: #{tpu_custom_call.1} parent=11 // pred_region
          _
        $region20: #{tpu_custom_call.1} parent=11 // pred_fallthru
          _
        // Predicated region
        $region21: #{tpu_custom_call.1} parent=11 // pred_check
          %p362 = pneg %p148
        $region22: #{tpu_custom_call.1} parent=11 // pred_check_branch
          %364 = sbr.rel (%p362) target = $region24
        $region23: #{tpu_custom_call.1} parent=11 // pred_region
          %s366 = ssub.s32 1024, 1024
          %367 = vsyncadd [#allocation9], %s366
          %s368 = sshll.u32 [#allocation8], 4
          %s369 = int_to_ptr.vmem [resolvable:$true] %s368
          %374 = dma.hbm_to_vmem [thread:$0]  %s4, 1024, %s369, [#allocation9], 64, 64, 4
        $region24: #{tpu_custom_call.1} parent=11 // pred_fallthru
          _
        // Predicated region
        $region25: #{tpu_custom_call.1} parent=11 // pred_check
          %p375 = pneg %p169
        $region26: #{tpu_custom_call.1} parent=11 // pred_check_branch
          %377 = sbr.rel (%p375) target = $region28
        $region27: #{tpu_custom_call.1} parent=11 // pred_region
          _
        $region28: #{tpu_custom_call.1} parent=11 // pred_fallthru
          _
        // Predicated region
        $region29: #{tpu_custom_call.1} parent=11 // pred_check
          %p378 = pneg %p190
        $region30: #{tpu_custom_call.1} parent=11 // pred_check_branch
          %380 = sbr.rel (%p378) target = $region32
        $region31: #{tpu_custom_call.1} parent=11 // pred_region
          %s382 = ssub.s32 1024, 1024
          %383 = vsyncadd [#allocation9], %s382
          %s384 = sshll.u32 [#allocation10], 4
          %s385 = int_to_ptr.vmem [resolvable:$true] %s384
          %390 = dma.hbm_to_vmem [thread:$0]  %s6, 1024, %s385, [#allocation9], 64, 64, 4
        $region32: #{tpu_custom_call.1} parent=11 // pred_fallthru
          _
        // Predicated region
        $region33: #{tpu_custom_call.1} parent=11 // pred_check
          %p391 = pneg %p211
        $region34: #{tpu_custom_call.1} parent=11 // pred_check_branch
          %393 = sbr.rel (%p391) target = $region36
        $region35: #{tpu_custom_call.1} parent=11 // pred_region
          _
        $region36: #{tpu_custom_call.1} parent=11 // pred_fallthru
          _
        // Predicated region
        $region37: #{tpu_custom_call.1} parent=11 // pred_check
          %p394 = pneg %p232
        $region38: #{tpu_custom_call.1} parent=11 // pred_check_branch
          %396 = sbr.rel (%p394) target = $region40
        $region39: #{tpu_custom_call.1} parent=11 // pred_region
          %s398 = ssub.s32 1024, 1024
          %399 = vsyncadd [#allocation12], %s398
          %s400 = sshll.u32 [#allocation11], 4
          %s401 = int_to_ptr.vmem [resolvable:$true] %s400
          %406 = dma.hbm_to_vmem [thread:$0]  %s8, 1024, %s401, [#allocation12], 64, 64, 4
        $region40: #{tpu_custom_call.1} parent=11 // pred_fallthru
          _
        // Predicated region
        $region41: #{tpu_custom_call.1} parent=11 // pred_check
          %p407 = pneg %p253
        $region42: #{tpu_custom_call.1} parent=11 // pred_check_branch
          %409 = sbr.rel (%p407) target = $region44
        $region43: #{tpu_custom_call.1} parent=11 // pred_region
          _
        $region44: #{tpu_custom_call.1} parent=11 // pred_fallthru
          _
      $region12: #{tpu_custom_call.1} parent=5 // pred_fallthru
        _
      %p410 = scmp.lt.s32.totalorder %s33, 2
      // Predicated region
      $region45: #{tpu_custom_call.1} parent=5 // pred_check
        %p411 = pneg %p410
      $region46: #{tpu_custom_call.1} parent=5 // pred_check_branch
        %413 = sbr.rel (%p411) target = $region48
      $region47: #{tpu_custom_call.1} parent=5 // pred_region
        // Predicated region
        $region49: #{tpu_custom_call.1} parent=47 // pred_check
          %p414 = pneg %p53
        $region50: #{tpu_custom_call.1} parent=47 // pred_check_branch
          %416 = sbr.rel (%p414) target = $region52
        $region51: #{tpu_custom_call.1} parent=47 // pred_region
          %s417 = sand.u32 %s43, 1
          %s418 = scalar_lea.sflag [#allocation3], %s417
          %s419 = sand.u32 %s43, 1
          %s420 = smul.addr %s419, 4
          %s421 = scalar_lea.vmem [#allocation2], %s420
          %s423 = ssub.s32 64, 64
          %424 = vsyncadd %s418, %s423
          %s425 = smul.addr %s33, 64
          %s426 = scalar_lea.hbm %s0, %s425
          %s428 = sshll.u32 %s421, 4
          %s429 = int_to_ptr.vmem [resolvable:$true] %s428
          %431 = dma.hbm_to_vmem [thread:$0]  %s426, 64, %s429, %s418
        $region52: #{tpu_custom_call.1} parent=47 // pred_fallthru
          _
        // Predicated region
        $region53: #{tpu_custom_call.1} parent=47 // pred_check
          %p432 = pneg %p79
        $region54: #{tpu_custom_call.1} parent=47 // pred_check_branch
          %434 = sbr.rel (%p432) target = $region56
        $region55: #{tpu_custom_call.1} parent=47 // pred_region
          %s435 = sand.u32 %s33, 1
          %s436 = scalar_lea.sflag [#allocation6], %s435
          %s437 = sand.u32 %s69, 1
          %s438 = smul.addr %s437, 4
          %s439 = scalar_lea.vmem [#allocation5], %s438
          %s441 = ssub.s32 64, 64
          %442 = vsyncadd %s436, %s441
          %s443 = smul.addr %s33, 64
          %s444 = scalar_lea.hbm %s1, %s443
          %s446 = sshll.u32 %s439, 4
          %s447 = int_to_ptr.vmem [resolvable:$true] %s446
          %449 = dma.hbm_to_vmem [thread:$0]  %s444, 64, %s447, %s436
        $region56: #{tpu_custom_call.1} parent=47 // pred_fallthru
          _
      $region48: #{tpu_custom_call.1} parent=5 // pred_fallthru
        _
      %p450 = scmp.le.s32.totalorder 1, %s33
      %p451 = scmp.lt.s32.totalorder %s33, 3
      %p452 = pnand %p450, %p451
      %p453 = pneg %p452
      // Predicated region
      $region57: #{tpu_custom_call.1} parent=5 // pred_check
        _
      $region58: #{tpu_custom_call.1} parent=5 // pred_check_branch
        %455 = sbr.rel (%p452) target = $region60
      $region59: #{tpu_custom_call.1} parent=5 // pred_region
        %s456 = ssub.s32 %s33, 1
        %s457 = sand.u32 %s46, 1
        %s458 = scalar_lea.sflag [#allocation3], %s457
        %s459 = sand.u32 %s46, 1
        %s460 = smul.addr %s459, 4
        %s461 = scalar_lea.vmem [#allocation2], %s460
        // Predicated region
        $region61: #{tpu_custom_call.1} parent=59 // pred_check
          %p462 = pneg %p59
        $region62: #{tpu_custom_call.1} parent=59 // pred_check_branch
          %464 = sbr.rel (%p462) target = $region64
        $region63: #{tpu_custom_call.1} parent=59 // pred_region
          %465 = dma.done %s458, 64
        $region64: #{tpu_custom_call.1} parent=59 // pred_fallthru
          _
        %s466 = sand.u32 %s38, 1
        %s467 = scalar_lea.sflag [#allocation6], %s466
        %s468 = sand.u32 %s72, 1
        %s469 = smul.addr %s468, 4
        %s470 = scalar_lea.vmem [#allocation5], %s469
        // Predicated region
        $region65: #{tpu_custom_call.1} parent=59 // pred_check
          %p471 = pneg %p85
        $region66: #{tpu_custom_call.1} parent=59 // pred_check_branch
          %473 = sbr.rel (%p471) target = $region68
        $region67: #{tpu_custom_call.1} parent=59 // pred_region
          %474 = dma.done %s467, 64
        $region68: #{tpu_custom_call.1} parent=59 // pred_fallthru
          _
        // Predicated region
        $region69: #{tpu_custom_call.1} parent=59 // pred_check
          %p475 = pneg %p106
        $region70: #{tpu_custom_call.1} parent=59 // pred_check_branch
          %477 = sbr.rel (%p475) target = $region72
        $region71: #{tpu_custom_call.1} parent=59 // pred_region
          %478 = dma.done [#allocation6], 1024
        $region72: #{tpu_custom_call.1} parent=59 // pred_fallthru
          _
        // Predicated region
        $region73: #{tpu_custom_call.1} parent=59 // pred_check
          %p479 = pneg %p148
        $region74: #{tpu_custom_call.1} parent=59 // pred_check_branch
          %481 = sbr.rel (%p479) target = $region76
        $region75: #{tpu_custom_call.1} parent=59 // pred_region
          %482 = dma.done [#allocation9], 1024
        $region76: #{tpu_custom_call.1} parent=59 // pred_fallthru
          _
        // Predicated region
        $region77: #{tpu_custom_call.1} parent=59 // pred_check
          %p483 = pneg %p190
        $region78: #{tpu_custom_call.1} parent=59 // pred_check_branch
          %485 = sbr.rel (%p483) target = $region80
        $region79: #{tpu_custom_call.1} parent=59 // pred_region
          %486 = dma.done [#allocation9], 1024
        $region80: #{tpu_custom_call.1} parent=59 // pred_fallthru
          _
        // Predicated region
        $region81: #{tpu_custom_call.1} parent=59 // pred_check
          %p487 = pneg %p232
        $region82: #{tpu_custom_call.1} parent=59 // pred_check_branch
          %489 = sbr.rel (%p487) target = $region84
        $region83: #{tpu_custom_call.1} parent=59 // pred_region
          %490 = dma.done [#allocation12], 1024
        $region84: #{tpu_custom_call.1} parent=59 // pred_fallthru
          _
        %s491 = sand.u32 %s46, 1
        %s492 = scalar_lea.sflag [#allocation3], %s491
        %s493 = sand.u32 %s46, 1
        %s494 = smul.addr %s493, 4
        %s495 = scalar_lea.vmem [#allocation2], %s494
        %p496 = pneg %p59
        %p497 = pneg %p56
        %s498 = sand.u32 %s38, 1
        %s499 = scalar_lea.sflag [#allocation6], %s498
        %s500 = sand.u32 %s72, 1
        %s501 = smul.addr %s500, 4
        %s502 = scalar_lea.vmem [#allocation5], %s501
        %p503 = pneg %p85
        %p504 = pneg %p82
        %p505 = pneg %p106
        %p506 = pneg %p103
        %p507 = pneg %p127
        %p508 = pneg %p124
        %p509 = pneg %p148
        %p510 = pneg %p145
        %p511 = pneg %p169
        %p512 = pneg %p166
        %p513 = pneg %p190
        %p514 = pneg %p187
        %p515 = pneg %p211
        %p516 = pneg %p208
        %p517 = pneg %p232
        %p518 = pneg %p229
        %p519 = pneg %p253
        %p520 = pneg %p250
        %p521 = pneg %p279
        %p522 = pneg %p276
        %s523 = sand.u32 %s266, 1
        %s524 = scalar_lea.sflag [#allocation4], %s523
        %s525 = sand.u32 %s266, 1
        %s526 = smul.addr %s525, 4
        %s527 = scalar_lea.vmem [#allocation13], %s526
        %p528 = pneg %p305
        %p529 = pneg %p302
        %s530 = sand.u32 %s38, 1
        %s531 = scalar_lea.sflag [#allocation15], %s530
        %s532 = sand.u32 %s292, 1
        %s533 = smul.addr %s532, 4
        %s534 = scalar_lea.vmem [#allocation14], %s533
        %p535 = pneg %p331
        %p536 = pneg %p328
        %s537 = sand.u32 %s38, 1
        %s538 = scalar_lea.sflag [#allocation15], %s537
        %s539 = sand.u32 %s318, 1
        %s540 = smul.addr %s539, 4
        %s541 = scalar_lea.vmem [#allocation16], %s540
        %v543 = vld [vmem:[%s461] sm:$0xf]
        %v544 = vld [vmem:[#allocation7] sm:$0xf]
        %v545 = vld [vmem:[#allocation7 + $0x4] sm:$0xf]
        %v546 = vld [vmem:[#allocation7 + $0x8] sm:$0xf]
        %v547 = vld [vmem:[#allocation7 + $0xc] sm:$0xf]
        %v548 = vld [vmem:[#allocation7 + $0x10] sm:$0xf]
        %v549 = vld [vmem:[#allocation7 + $0x14] sm:$0xf]
        %v550 = vld [vmem:[#allocation7 + $0x18] sm:$0xf]
        %v551 = vld [vmem:[#allocation7 + $0x1c] sm:$0xf]
        %v552 = vld [vmem:[#allocation7 + $0x20] sm:$0xf]
        %v553 = vld [vmem:[#allocation7 + $0x24] sm:$0xf]
        %v554 = vld [vmem:[#allocation7 + $0x28] sm:$0xf]
        %v555 = vld [vmem:[#allocation7 + $0x2c] sm:$0xf]
        %v556 = vld [vmem:[#allocation7 + $0x30] sm:$0xf]
        %v557 = vld [vmem:[#allocation7 + $0x34] sm:$0xf]
        %v558 = vld [vmem:[#allocation7 + $0x38] sm:$0xf]
        %v559 = vld [vmem:[#allocation7 + $0x3c] sm:$0xf]
        %v560 = vld [vmem:[%s3] sm:$0x1]
        %v562 = vlaneseq
        %v563 = vshrl.u32 %v562, 7
        %v564 = vsub.s32 0, %v563
        %v565 = vrot.slane %v560, %v564
        %v583 = vunpack.c.l.b16 %v544
        %v584 = vunpack.c.l.b16 %v545
        %v585 = vunpack.c.l.b16 %v546
        %v586 = vunpack.c.l.b16 %v547
        %v587 = vunpack.c.l.b16 %v548
        %v588 = vunpack.c.l.b16 %v549
        %v589 = vunpack.c.l.b16 %v550
        %v590 = vunpack.c.l.b16 %v551
        %v591 = vunpack.c.l.b16 %v552
        %v592 = vunpack.c.l.b16 %v553
        %v593 = vunpack.c.l.b16 %v554
        %v594 = vunpack.c.l.b16 %v555
        %v595 = vunpack.c.l.b16 %v556
        %v596 = vunpack.c.l.b16 %v557
        %v597 = vunpack.c.l.b16 %v558
        %v598 = vunpack.c.l.b16 %v559
        %v599 = vpack.c.b16 %v584, %v583
        %v600 = vpack.c.b16 %v586, %v585
        %v601 = vpack.c.b16 %v588, %v587
        %v602 = vpack.c.b16 %v590, %v589
        %v603 = vpack.c.b16 %v592, %v591
        %v604 = vpack.c.b16 %v594, %v593
        %v605 = vpack.c.b16 %v596, %v595
        %v606 = vpack.c.b16 %v598, %v597
        %615 = vmatprep.subr.bf16.mxu0 0
        %616 = vmatpush1.bf16.msra.mxu0 %v599
        %617 = vmatprep.subr.bf16.mxu0 0
        %618 = vmatpush1.bf16.msra.mxu0 %v600
        %619 = vmatprep.subr.bf16.mxu0 0
        %620 = vmatpush1.bf16.msra.mxu0 %v601
        %621 = vmatprep.subr.bf16.mxu0 0
        %622 = vmatpush1.bf16.msra.mxu0 %v602
        %623 = vmatprep.subr.bf16.mxu0 0
        %624 = vmatpush1.bf16.msra.mxu0 %v603
        %625 = vmatprep.subr.bf16.mxu0 0
        %626 = vmatpush1.bf16.msra.mxu0 %v604
        %627 = vmatprep.subr.bf16.mxu0 0
        %628 = vmatpush1.bf16.msra.mxu0 %v605
        %629 = vmatprep.subr.bf16.mxu0 0
        %630 = vmatpush1.bf16.msra.mxu0 %v606
        %631 = vmatprep.subr.bf16.mxu0 0
        %632 = vmatpush1.bf16.msra.mxu0 0
        %633 = vmatprep.subr.bf16.mxu0 0
        %634 = vmatpush1.bf16.msra.mxu0 0
        %635 = vmatprep.subr.bf16.mxu0 0
        %636 = vmatpush1.bf16.msra.mxu0 0
        %637 = vmatprep.subr.bf16.mxu0 0
        %638 = vmatpush1.bf16.msra.mxu0 0
        %639 = vmatprep.subr.bf16.mxu0 0
        %640 = vmatpush1.bf16.msra.mxu0 0
        %641 = vmatprep.subr.bf16.mxu0 0
        %642 = vmatpush1.bf16.msra.mxu0 0
        %643 = vmatprep.subr.bf16.mxu0 0
        %644 = vmatpush1.bf16.msra.mxu0 0
        %645 = vmatprep.subr.bf16.mxu0 0
        %646 = vmatpush1.bf16.msra.mxu0 0
        %647 = vmatprep.mubr.bf16.mxu0 0
        %648 = vmatmul.mubr.bf16.gmra.mrb[0].mxu0 %v543
        %v649 = vpop.f32.mrb[0].mxu0
        %v650 = vadd.f32 %v565, %v649
        %v651 = vpop.f32.mrb[0].mxu0
        %v652 = vpop.f32.mrb[0].mxu0
        %v653 = vpop.f32.mrb[0].mxu0
        %654 = vdwg.mxu0
        %v655 = vmul.f32 %v650, 0.01
        %v656 = vmax.f32 %v650, %v655
        %v657 = vpack.c.bf16 %v656, %v656
        %v658 = vld [vmem:[#allocation8] sm:$0xf]
        %v659 = vld [vmem:[#allocation8 + $0x4] sm:$0xf]
        %v660 = vld [vmem:[#allocation8 + $0x8] sm:$0xf]
        %v661 = vld [vmem:[#allocation8 + $0xc] sm:$0xf]
        %v662 = vld [vmem:[#allocation8 + $0x10] sm:$0xf]
        %v663 = vld [vmem:[#allocation8 + $0x14] sm:$0xf]
        %v664 = vld [vmem:[#allocation8 + $0x18] sm:$0xf]
        %v665 = vld [vmem:[#allocation8 + $0x1c] sm:$0xf]
        %v666 = vld [vmem:[#allocation8 + $0x20] sm:$0xf]
        %v667 = vld [vmem:[#allocation8 + $0x24] sm:$0xf]
        %v668 = vld [vmem:[#allocation8 + $0x28] sm:$0xf]
        %v669 = vld [vmem:[#allocation8 + $0x2c] sm:$0xf]
        %v670 = vld [vmem:[#allocation8 + $0x30] sm:$0xf]
        %v671 = vld [vmem:[#allocation8 + $0x34] sm:$0xf]
        %v672 = vld [vmem:[#allocation8 + $0x38] sm:$0xf]
        %v673 = vld [vmem:[#allocation8 + $0x3c] sm:$0xf]
        %v674 = vld [vmem:[%s5] sm:$0x1]
        %v676 = vlaneseq
        %v677 = vshrl.u32 %v676, 7
        %v678 = vsub.s32 0, %v677
        %v679 = vrot.slane %v674, %v678
        %v697 = vunpack.c.l.b16 %v658
        %v698 = vunpack.c.l.b16 %v659
        %v699 = vunpack.c.l.b16 %v660
        %v700 = vunpack.c.l.b16 %v661
        %v701 = vunpack.c.l.b16 %v662
        %v702 = vunpack.c.l.b16 %v663
        %v703 = vunpack.c.l.b16 %v664
        %v704 = vunpack.c.l.b16 %v665
        %v705 = vunpack.c.l.b16 %v666
        %v706 = vunpack.c.l.b16 %v667
        %v707 = vunpack.c.l.b16 %v668
        %v708 = vunpack.c.l.b16 %v669
        %v709 = vunpack.c.l.b16 %v670
        %v710 = vunpack.c.l.b16 %v671
        %v711 = vunpack.c.l.b16 %v672
        %v712 = vunpack.c.l.b16 %v673
        %v713 = vpack.c.b16 %v698, %v697
        %v714 = vpack.c.b16 %v700, %v699
        %v715 = vpack.c.b16 %v702, %v701
        %v716 = vpack.c.b16 %v704, %v703
        %v717 = vpack.c.b16 %v706, %v705
        %v718 = vpack.c.b16 %v708, %v707
        %v719 = vpack.c.b16 %v710, %v709
        %v720 = vpack.c.b16 %v712, %v711
        %729 = vmatprep.subr.bf16.mxu0 0
        %730 = vmatpush1.bf16.msra.mxu0 %v713
        %731 = vmatprep.subr.bf16.mxu0 0
        %732 = vmatpush1.bf16.msra.mxu0 %v714
        %733 = vmatprep.subr.bf16.mxu0 0
        %734 = vmatpush1.bf16.msra.mxu0 %v715
        %735 = vmatprep.subr.bf16.mxu0 0
        %736 = vmatpush1.bf16.msra.mxu0 %v716
        %737 = vmatprep.subr.bf16.mxu0 0
        %738 = vmatpush1.bf16.msra.mxu0 %v717
        %739 = vmatprep.subr.bf16.mxu0 0
        %740 = vmatpush1.bf16.msra.mxu0 %v718
        %741 = vmatprep.subr.bf16.mxu0 0
        %742 = vmatpush1.bf16.msra.mxu0 %v719
        %743 = vmatprep.subr.bf16.mxu0 0
        %744 = vmatpush1.bf16.msra.mxu0 %v720
        %745 = vmatprep.subr.bf16.mxu0 0
        %746 = vmatpush1.bf16.msra.mxu0 0
        %747 = vmatprep.subr.bf16.mxu0 0
        %748 = vmatpush1.bf16.msra.mxu0 0
        %749 = vmatprep.subr.bf16.mxu0 0
        %750 = vmatpush1.bf16.msra.mxu0 0
        %751 = vmatprep.subr.bf16.mxu0 0
        %752 = vmatpush1.bf16.msra.mxu0 0
        %753 = vmatprep.subr.bf16.mxu0 0
        %754 = vmatpush1.bf16.msra.mxu0 0
        %755 = vmatprep.subr.bf16.mxu0 0
        %756 = vmatpush1.bf16.msra.mxu0 0
        %757 = vmatprep.subr.bf16.mxu0 0
        %758 = vmatpush1.bf16.msra.mxu0 0
        %759 = vmatprep.subr.bf16.mxu0 0
        %760 = vmatpush1.bf16.msra.mxu0 0
        %761 = vmatprep.mubr.bf16.mxu0 0
        %762 = vmatmul.mubr.bf16.gmra.mrb[0].mxu0 %v657
        %v763 = vpop.f32.mrb[0].mxu0
        %v764 = vadd.f32 %v679, %v763
        %v765 = vpop.f32.mrb[0].mxu0
        %v766 = vpop.f32.mrb[0].mxu0
        %v767 = vpop.f32.mrb[0].mxu0
        %768 = vdwg.mxu0
        %v769 = vpack.c.bf16 %v764, %v764
        %770 = vst [vmem:[%s527] sm:$0xf] %v769
        %v771 = vmul.f32 %v764, 0.5
        %v772 = vmul.f32 %v771, 1.442695
        %v773 = vpow.pop %v772
        %v774 = vld [vmem:[%s470] sm:$0xf]
        %v775 = vunpack.c.l.bf16 %v774
        %v776 = vmul.f32 %v775, %v773
        %v777 = vadd.f32 %v776, %v764
        %v778 = vpack.c.bf16 %v777, %v777
        %779 = vst [vmem:[%s534] sm:$0xf] %v778
        %v780 = vld [vmem:[#allocation10] sm:$0xf]
        %v781 = vld [vmem:[#allocation10 + $0x4] sm:$0xf]
        %v782 = vld [vmem:[#allocation10 + $0x8] sm:$0xf]
        %v783 = vld [vmem:[#allocation10 + $0xc] sm:$0xf]
        %v784 = vld [vmem:[#allocation10 + $0x10] sm:$0xf]
        %v785 = vld [vmem:[#allocation10 + $0x14] sm:$0xf]
        %v786 = vld [vmem:[#allocation10 + $0x18] sm:$0xf]
        %v787 = vld [vmem:[#allocation10 + $0x1c] sm:$0xf]
        %v788 = vld [vmem:[#allocation10 + $0x20] sm:$0xf]
        %v789 = vld [vmem:[#allocation10 + $0x24] sm:$0xf]
        %v790 = vld [vmem:[#allocation10 + $0x28] sm:$0xf]
        %v791 = vld [vmem:[#allocation10 + $0x2c] sm:$0xf]
        %v792 = vld [vmem:[#allocation10 + $0x30] sm:$0xf]
        %v793 = vld [vmem:[#allocation10 + $0x34] sm:$0xf]
        %v794 = vld [vmem:[#allocation10 + $0x38] sm:$0xf]
        %v795 = vld [vmem:[#allocation10 + $0x3c] sm:$0xf]
        %v796 = vld [vmem:[%s7] sm:$0x1]
        %v798 = vlaneseq
        %v799 = vshrl.u32 %v798, 7
        %v800 = vsub.s32 0, %v799
        %v801 = vrot.slane %v796, %v800
        %v819 = vunpack.c.l.b16 %v780
        %v820 = vunpack.c.l.b16 %v781
        %v821 = vunpack.c.l.b16 %v782
        %v822 = vunpack.c.l.b16 %v783
        %v823 = vunpack.c.l.b16 %v784
        %v824 = vunpack.c.l.b16 %v785
        %v825 = vunpack.c.l.b16 %v786
        %v826 = vunpack.c.l.b16 %v787
        %v827 = vunpack.c.l.b16 %v788
        %v828 = vunpack.c.l.b16 %v789
        %v829 = vunpack.c.l.b16 %v790
        %v830 = vunpack.c.l.b16 %v791
        %v831 = vunpack.c.l.b16 %v792
        %v832 = vunpack.c.l.b16 %v793
        %v833 = vunpack.c.l.b16 %v794
        %v834 = vunpack.c.l.b16 %v795
        %v835 = vpack.c.b16 %v820, %v819
        %v836 = vpack.c.b16 %v822, %v821
        %v837 = vpack.c.b16 %v824, %v823
        %v838 = vpack.c.b16 %v826, %v825
        %v839 = vpack.c.b16 %v828, %v827
        %v840 = vpack.c.b16 %v830, %v829
        %v841 = vpack.c.b16 %v832, %v831
        %v842 = vpack.c.b16 %v834, %v833
        %851 = vmatprep.subr.bf16.mxu0 0
        %852 = vmatpush1.bf16.msra.mxu0 %v835
        %853 = vmatprep.subr.bf16.mxu0 0
        %854 = vmatpush1.bf16.msra.mxu0 %v836
        %855 = vmatprep.subr.bf16.mxu0 0
        %856 = vmatpush1.bf16.msra.mxu0 %v837
        %857 = vmatprep.subr.bf16.mxu0 0
        %858 = vmatpush1.bf16.msra.mxu0 %v838
        %859 = vmatprep.subr.bf16.mxu0 0
        %860 = vmatpush1.bf16.msra.mxu0 %v839
        %861 = vmatprep.subr.bf16.mxu0 0
        %862 = vmatpush1.bf16.msra.mxu0 %v840
        %863 = vmatprep.subr.bf16.mxu0 0
        %864 = vmatpush1.bf16.msra.mxu0 %v841
        %865 = vmatprep.subr.bf16.mxu0 0
        %866 = vmatpush1.bf16.msra.mxu0 %v842
        %867 = vmatprep.subr.bf16.mxu0 0
        %868 = vmatpush1.bf16.msra.mxu0 0
        %869 = vmatprep.subr.bf16.mxu0 0
        %870 = vmatpush1.bf16.msra.mxu0 0
        %871 = vmatprep.subr.bf16.mxu0 0
        %872 = vmatpush1.bf16.msra.mxu0 0
        %873 = vmatprep.subr.bf16.mxu0 0
        %874 = vmatpush1.bf16.msra.mxu0 0
        %875 = vmatprep.subr.bf16.mxu0 0
        %876 = vmatpush1.bf16.msra.mxu0 0
        %877 = vmatprep.subr.bf16.mxu0 0
        %878 = vmatpush1.bf16.msra.mxu0 0
        %879 = vmatprep.subr.bf16.mxu0 0
        %880 = vmatpush1.bf16.msra.mxu0 0
        %881 = vmatprep.subr.bf16.mxu0 0
        %882 = vmatpush1.bf16.msra.mxu0 0
        %883 = vmatprep.mubr.bf16.mxu0 0
        %884 = vmatmul.mubr.bf16.gmra.mrb[0].mxu0 %v778
        %v885 = vpop.f32.mrb[0].mxu0
        %v886 = vadd.f32 %v801, %v885
        %v887 = vpop.f32.mrb[0].mxu0
        %v888 = vpop.f32.mrb[0].mxu0
        %v889 = vpop.f32.mrb[0].mxu0
        %890 = vdwg.mxu0
        %v891 = vmul.f32 %v886, 0.01
        %v892 = vmax.f32 %v886, %v891
        %v893 = vpack.c.bf16 %v892, %v892
        %v894 = vld [vmem:[#allocation11] sm:$0xf]
        %v895 = vld [vmem:[#allocation11 + $0x4] sm:$0xf]
        %v896 = vld [vmem:[#allocation11 + $0x8] sm:$0xf]
        %v897 = vld [vmem:[#allocation11 + $0xc] sm:$0xf]
        %v898 = vld [vmem:[#allocation11 + $0x10] sm:$0xf]
        %v899 = vld [vmem:[#allocation11 + $0x14] sm:$0xf]
        %v900 = vld [vmem:[#allocation11 + $0x18] sm:$0xf]
        %v901 = vld [vmem:[#allocation11 + $0x1c] sm:$0xf]
        %v902 = vld [vmem:[#allocation11 + $0x20] sm:$0xf]
        %v903 = vld [vmem:[#allocation11 + $0x24] sm:$0xf]
        %v904 = vld [vmem:[#allocation11 + $0x28] sm:$0xf]
        %v905 = vld [vmem:[#allocation11 + $0x2c] sm:$0xf]
        %v906 = vld [vmem:[#allocation11 + $0x30] sm:$0xf]
        %v907 = vld [vmem:[#allocation11 + $0x34] sm:$0xf]
        %v908 = vld [vmem:[#allocation11 + $0x38] sm:$0xf]
        %v909 = vld [vmem:[#allocation11 + $0x3c] sm:$0xf]
        %v910 = vld [vmem:[%s9] sm:$0x1]
        %v912 = vlaneseq
        %v913 = vshrl.u32 %v912, 7
        %v914 = vsub.s32 0, %v913
        %v915 = vrot.slane %v910, %v914
        %v933 = vunpack.c.l.b16 %v894
        %v934 = vunpack.c.l.b16 %v895
        %v935 = vunpack.c.l.b16 %v896
        %v936 = vunpack.c.l.b16 %v897
        %v937 = vunpack.c.l.b16 %v898
        %v938 = vunpack.c.l.b16 %v899
        %v939 = vunpack.c.l.b16 %v900
        %v940 = vunpack.c.l.b16 %v901
        %v941 = vunpack.c.l.b16 %v902
        %v942 = vunpack.c.l.b16 %v903
        %v943 = vunpack.c.l.b16 %v904
        %v944 = vunpack.c.l.b16 %v905
        %v945 = vunpack.c.l.b16 %v906
        %v946 = vunpack.c.l.b16 %v907
        %v947 = vunpack.c.l.b16 %v908
        %v948 = vunpack.c.l.b16 %v909
        %v949 = vpack.c.b16 %v934, %v933
        %v950 = vpack.c.b16 %v936, %v935
        %v951 = vpack.c.b16 %v938, %v937
        %v952 = vpack.c.b16 %v940, %v939
        %v953 = vpack.c.b16 %v942, %v941
        %v954 = vpack.c.b16 %v944, %v943
        %v955 = vpack.c.b16 %v946, %v945
        %v956 = vpack.c.b16 %v948, %v947
        %965 = vmatprep.subr.bf16.mxu0 0
        %966 = vmatpush1.bf16.msra.mxu0 %v949
        %967 = vmatprep.subr.bf16.mxu0 0
        %968 = vmatpush1.bf16.msra.mxu0 %v950
        %969 = vmatprep.subr.bf16.mxu0 0
        %970 = vmatpush1.bf16.msra.mxu0 %v951
        %971 = vmatprep.subr.bf16.mxu0 0
        %972 = vmatpush1.bf16.msra.mxu0 %v952
        %973 = vmatprep.subr.bf16.mxu0 0
        %974 = vmatpush1.bf16.msra.mxu0 %v953
        %975 = vmatprep.subr.bf16.mxu0 0
        %976 = vmatpush1.bf16.msra.mxu0 %v954
        %977 = vmatprep.subr.bf16.mxu0 0
        %978 = vmatpush1.bf16.msra.mxu0 %v955
        %979 = vmatprep.subr.bf16.mxu0 0
        %980 = vmatpush1.bf16.msra.mxu0 %v956
        %981 = vmatprep.subr.bf16.mxu0 0
        %982 = vmatpush1.bf16.msra.mxu0 0
        %983 = vmatprep.subr.bf16.mxu0 0
        %984 = vmatpush1.bf16.msra.mxu0 0
        %985 = vmatprep.subr.bf16.mxu0 0
        %986 = vmatpush1.bf16.msra.mxu0 0
        %987 = vmatprep.subr.bf16.mxu0 0
        %988 = vmatpush1.bf16.msra.mxu0 0
        %989 = vmatprep.subr.bf16.mxu0 0
        %990 = vmatpush1.bf16.msra.mxu0 0
        %991 = vmatprep.subr.bf16.mxu0 0
        %992 = vmatpush1.bf16.msra.mxu0 0
        %993 = vmatprep.subr.bf16.mxu0 0
        %994 = vmatpush1.bf16.msra.mxu0 0
        %995 = vmatprep.subr.bf16.mxu0 0
        %996 = vmatpush1.bf16.msra.mxu0 0
        %997 = vmatprep.mubr.bf16.mxu0 0
        %998 = vmatmul.mubr.bf16.gmra.mrb[0].mxu0 %v893
        %v999 = vpop.f32.mrb[0].mxu0
        %v1000 = vadd.f32 %v915, %v999
        %v1001 = vpop.f32.mrb[0].mxu0
        %v1002 = vpop.f32.mrb[0].mxu0
        %v1003 = vpop.f32.mrb[0].mxu0
        %1004 = vdwg.mxu0
        %v1005 = vmul.f32 %v1000, 0.5
        %v1006 = vtanh.pop %v1005
        %v1007 = vmul.f32 %v1006, 0.5
        %v1008 = vadd.f32 %v1007, 0.5
        %v1009 = vpack.c.bf16 %v1008, %v1008
        %1010 = vst [vmem:[%s541] sm:$0xf] %v1009
        %s1011 = sand.u32 %s266, 1
        %s1012 = scalar_lea.sflag [#allocation4], %s1011
        %s1013 = sand.u32 %s266, 1
        %s1014 = smul.addr %s1013, 4
        %s1015 = scalar_lea.vmem [#allocation13], %s1014
        %s1016 = sand.u32 %s38, 1
        %s1017 = scalar_lea.sflag [#allocation15], %s1016
        %s1018 = sand.u32 %s292, 1
        %s1019 = smul.addr %s1018, 4
        %s1020 = scalar_lea.vmem [#allocation14], %s1019
        %s1021 = sand.u32 %s38, 1
        %s1022 = scalar_lea.sflag [#allocation15], %s1021
        %s1023 = sand.u32 %s318, 1
        %s1024 = smul.addr %s1023, 4
        %s1025 = scalar_lea.vmem [#allocation16], %s1024
        // Predicated region
        $region85: #{tpu_custom_call.1} parent=59 // pred_check
          %p1026 = pneg %p276
        $region86: #{tpu_custom_call.1} parent=59 // pred_check_branch
          %1028 = sbr.rel (%p1026) target = $region88
        $region87: #{tpu_custom_call.1} parent=59 // pred_region
          %s1030 = ssub.s32 64, 64
          %1031 = vsyncadd %s1012, %s1030
          %s1032 = smul.addr %s38, 64
          %s1033 = scalar_lea.hbm %s10, %s1032
          %s1035 = sshll.u32 %s1015, 4
          %s1036 = int_to_ptr.vmem [resolvable:$true] %s1035
          %1038 = dma.vmem_to_hbm [thread:$0]  %s1036, 64, %s1033, %s1012
        $region88: #{tpu_custom_call.1} parent=59 // pred_fallthru
          _
        // Predicated region
        $region89: #{tpu_custom_call.1} parent=59 // pred_check
          %p1039 = pneg %p302
        $region90: #{tpu_custom_call.1} parent=59 // pred_check_branch
          %1041 = sbr.rel (%p1039) target = $region92
        $region91: #{tpu_custom_call.1} parent=59 // pred_region
          %s1043 = ssub.s32 64, 64
          %1044 = vsyncadd %s1017, %s1043
          %s1045 = smul.addr %s38, 64
          %s1046 = scalar_lea.hbm %s11, %s1045
          %s1048 = sshll.u32 %s1020, 4
          %s1049 = int_to_ptr.vmem [resolvable:$true] %s1048
          %1051 = dma.vmem_to_hbm [thread:$0]  %s1049, 64, %s1046, %s1017
        $region92: #{tpu_custom_call.1} parent=59 // pred_fallthru
          _
        // Predicated region
        $region93: #{tpu_custom_call.1} parent=59 // pred_check
          %p1052 = pneg %p328
        $region94: #{tpu_custom_call.1} parent=59 // pred_check_branch
          %1054 = sbr.rel (%p1052) target = $region96
        $region95: #{tpu_custom_call.1} parent=59 // pred_region
          %s1056 = ssub.s32 64, 64
          %1057 = vsyncadd %s1022, %s1056
          %s1058 = smul.addr %s38, 64
          %s1059 = scalar_lea.hbm %s12, %s1058
          %s1061 = sshll.u32 %s1025, 4
          %s1062 = int_to_ptr.vmem [resolvable:$true] %s1061
          %1064 = dma.vmem_to_hbm [thread:$0]  %s1062, 64, %s1059, %s1022
        $region96: #{tpu_custom_call.1} parent=59 // pred_fallthru
          _
      $region60: #{tpu_custom_call.1} parent=5 // pred_fallthru
        _
      %p1065 = scmp.le.s32.totalorder 2, %s33
      // Predicated region
      $region97: #{tpu_custom_call.1} parent=5 // pred_check
        %p1066 = pneg %p1065
      $region98: #{tpu_custom_call.1} parent=5 // pred_check_branch
        %1068 = sbr.rel (%p1066) target = $region100
      $region99: #{tpu_custom_call.1} parent=5 // pred_region
        %s1069 = ssub.s32 %s33, 2
        // Predicated region
        $region101: #{tpu_custom_call.1} parent=99 // pred_check
          %p1070 = pneg %p282
        $region102: #{tpu_custom_call.1} parent=99 // pred_check_branch
          %1072 = sbr.rel (%p1070) target = $region104
        $region103: #{tpu_custom_call.1} parent=99 // pred_region
          %s1073 = sand.u32 %s267, 1
          %s1074 = scalar_lea.sflag [#allocation4], %s1073
          %s1075 = sand.u32 %s267, 1
          %s1076 = smul.addr %s1075, 4
          %s1077 = scalar_lea.vmem [#allocation13], %s1076
          %1078 = dma.done %s1074, 64
        $region104: #{tpu_custom_call.1} parent=99 // pred_fallthru
          _
        // Predicated region
        $region105: #{tpu_custom_call.1} parent=99 // pred_check
          %p1079 = pneg %p308
        $region106: #{tpu_custom_call.1} parent=99 // pred_check_branch
          %1081 = sbr.rel (%p1079) target = $region108
        $region107: #{tpu_custom_call.1} parent=99 // pred_region
          %s1082 = sand.u32 %s39, 1
          %s1083 = scalar_lea.sflag [#allocation15], %s1082
          %s1084 = sand.u32 %s293, 1
          %s1085 = smul.addr %s1084, 4
          %s1086 = scalar_lea.vmem [#allocation14], %s1085
          %1087 = dma.done %s1083, 64
        $region108: #{tpu_custom_call.1} parent=99 // pred_fallthru
          _
        // Predicated region
        $region109: #{tpu_custom_call.1} parent=99 // pred_check
          %p1088 = pneg %p334
        $region110: #{tpu_custom_call.1} parent=99 // pred_check_branch
          %1090 = sbr.rel (%p1088) target = $region112
        $region111: #{tpu_custom_call.1} parent=99 // pred_region
          %s1091 = sand.u32 %s39, 1
          %s1092 = scalar_lea.sflag [#allocation15], %s1091
          %s1093 = sand.u32 %s319, 1
          %s1094 = smul.addr %s1093, 4
          %s1095 = scalar_lea.vmem [#allocation16], %s1094
          %1096 = dma.done %s1092, 64
        $region112: #{tpu_custom_call.1} parent=99 // pred_fallthru
          _
      $region100: #{tpu_custom_call.1} parent=5 // pred_fallthru
        _
    $region6: #{tpu_custom_call.1} parent=1 // loop_footer
      %s37 = sadd.s32 1, %s33
    $region7: #{tpu_custom_call.1} parent=1 // loop_footer_branch
      %32 = sbr.rel target = $region3
    $region8: #{tpu_custom_call.1} parent=1 // loop_exit
      _
    %1097 = vsyncpa [#allocation3], 1
    %s1098 = scalar_lea.sflag [#allocation3], 1
    %1099 = vsyncpa %s1098, 1
    %1100 = vsyncpa [#allocation6], 1
    %s1101 = scalar_lea.sflag [#allocation6], 1
    %1102 = vsyncpa %s1101, 1
    %1103 = vsyncpa [#allocation9], 1
    %1104 = vsyncpa [#allocation12], 1
    %1105 = vsyncpa [#allocation4], 1
    %s1106 = scalar_lea.sflag [#allocation4], 1
    %1107 = vsyncpa %s1106, 1
    %1108 = vsyncpa [#allocation15], 1
    %s1109 = scalar_lea.sflag [#allocation15], 1
    %1110 = vsyncpa %s1109, 1

</llo_original>
